<compile_context>
chip_gen: v7x
topology: tpu7x:2x2x1
jax: 0.10.0
libtpu: 0.0.40
codegen_flags: <defaults>
</compile_context>

<pallas_src>
import functools

import jax
import jax.numpy as jnp
from jax.experimental import pallas as pl
from jax.experimental.pallas import tpu as pltpu

_EPS_NORM = 1e-12   # torch.nn.functional.normalize default eps
_EPS_DIST = 1e-6    # torch.nn.functional.pairwise_distance default eps
# NOTE: the per-element +eps_dist matches F.pairwise_distance and biases the
# distance upward by ~sqrt(D)*1e-6 even for identical inputs; pass eps_dist=0.0
# if plain ||x_hat - y_hat||_2 is intended.

_MEGACORE_MIN_TILES = 4            # aim for >= this many grid steps on big batches
_MIN_TILE_INPUT_BYTES = 1 << 20    # ~1 MiB per input buffer amortises per-step overhead


def _round_up(x: int, m: int) -> int:
    return ((x + m - 1) // m) * m


def _vmem_budgets():
    """(tile VMEM budget, vmem_limit_bytes) sized per TPU generation."""
    vmem_cap = 64 * 1024 * 1024            # conservative default = v7x per-TC VMEM
    try:
        vmem_cap = int(pltpu.get_tpu_info().vmem_capacity_bytes)
    except Exception:
        pass
    if vmem_cap >= 128 * 1024 * 1024:      # v5e / v6e (128 MiB)
        return 64 * 1024 * 1024, 96 * 1024 * 1024
    return 32 * 1024 * 1024, 48 * 1024 * 1024   # v7x (64 MiB per TensorCore)


def _choose_tile_b(B: int, D: int, itemsize: int, budget: int) -> int:
    """Batch-tile size: as big as the VMEM budget allows, but keep several tiles."""
    # Sublane tile multiple for the input dtype: f32 -> 8 rows, bf16/f16 -> 16.
    mult = 8 * max(1, 4 // itemsize)
    if B <= mult:
        return B                            # single block equal to the full batch dim
    # Per-row VMEM cost of the pipelined buffers:
    #   2 inputs x 2 pipeline buffers x D x itemsize
    # + 2 pipeline buffers x lane-padded (., 1) f32 output (padded to 128 lanes).
    per_row = 2 * 2 * D * itemsize + 2 * 128 * 4
    tb = max(mult, (budget // per_row) // mult * mult)
    # Keep >= _MEGACORE_MIN_TILES grid steps when the batch is large enough that
    # each tile's input DMA still exceeds ~1 MiB (v7x shards the "parallel" batch
    # axis across both TensorCores; tiny tiles would let per-step overhead dominate).
    rows_min = _round_up(max(1, _MIN_TILE_INPUT_BYTES // max(1, D * itemsize)), mult)
    tb = min(tb, max(rows_min, _round_up(pl.cdiv(B, _MEGACORE_MIN_TILES), mult)))
    # Never exceed the batch: keeps block rows <= array rows (ragged last block only).
    tb = min(tb, (B // mult) * mult)
    return max(tb, mult)


def _ned_kernel(x_ref, y_ref, o_ref, *, eps_norm, eps_dist):
    # Tile in VMEM: (TB, D); feature axis D on lanes, batch rows on sublanes.
    # All reductions are per-row (axis=-1), so garbage rows in a ragged final
    # block cannot contaminate real rows (their output stores are masked).
    x = x_ref[...].astype(jnp.float32)
    y = y_ref[...].astype(jnp.float32)

    # L2-normalise each row: x * rsqrt(max(sum(x^2), eps^2)) == x / max(||x||, eps).
    # rsqrt lowers to the EUP (separate bundle slot), keeping the VALU free.
    inv_x = jax.lax.rsqrt(
        jnp.maximum(jnp.sum(x * x, axis=-1, keepdims=True), eps_norm * eps_norm))
    inv_y = jax.lax.rsqrt(
        jnp.maximum(jnp.sum(y * y, axis=-1, keepdims=True), eps_norm * eps_norm))

    diff = x * inv_x - y * inv_y + eps_dist
    dist = jnp.sqrt(jnp.sum(diff * diff, axis=-1, keepdims=True))  # (TB, 1)
    o_ref[...] = dist.astype(o_ref.dtype)


def normalised_euclidean_distance(x: jax.Array, y: jax.Array, *,
                                  eps_norm: float = _EPS_NORM,
                                  eps_dist: float = _EPS_DIST) -> jax.Array:
    """x, y: (B, D) embeddings (any float dtype). Returns (B,) float32 distances."""
    assert x.shape == y.shape and x.ndim == 2, "expected matching (B, D) inputs"
    if y.dtype != x.dtype:
        y = y.astype(x.dtype)
    if x.dtype.itemsize > 4:                 # f64 etc.: TPU-unfriendly, drop to f32
        x = x.astype(jnp.float32)
        y = y.astype(jnp.float32)

    B, D = x.shape
    itemsize = jnp.dtype(x.dtype).itemsize
    tile_budget, vmem_limit = _vmem_budgets()
    tb = _choose_tile_b(B, D, itemsize, tile_budget)
    n_tiles = pl.cdiv(B, tb)

    kernel = functools.partial(_ned_kernel,
                               eps_norm=float(eps_norm), eps_dist=float(eps_dist))

    out = pl.pallas_call(
        kernel,
        out_shape=jax.ShapeDtypeStruct((B, 1), jnp.float32),
        grid_spec=pltpu.PrefetchScalarGridSpec(
            num_scalar_prefetch=0,
            grid=(n_tiles,),
            in_specs=[
                pl.BlockSpec((tb, D), lambda i: (i, 0)),
                pl.BlockSpec((tb, D), lambda i: (i, 0)),
            ],
            # (tb, 1) output: lane-padded in VMEM (budgeted in _choose_tile_b);
            # output HBM traffic is ~D x smaller than input traffic so it stays
            # negligible for this bandwidth-bound kernel.
            out_specs=pl.BlockSpec((tb, 1), lambda i: (i, 0)),
        ),
        compiler_params=pltpu.CompilerParams(
            # Independent batch tiles -> shardable across v7x's two TensorCores.
            dimension_semantics=("parallel",),
            vmem_limit_bytes=vmem_limit,
        ),
    )(x, y)
    return out[:, 0]


def _reference(x, y, eps_norm=_EPS_NORM, eps_dist=_EPS_DIST):
    x = x.astype(jnp.float32)
    y = y.astype(jnp.float32)
    xn = x / jnp.maximum(jnp.linalg.norm(x, axis=-1, keepdims=True), eps_norm)
    yn = y / jnp.maximum(jnp.linalg.norm(y, axis=-1, keepdims=True), eps_norm)
    d = xn - yn + eps_dist
    return jnp.sqrt(jnp.sum(d * d, axis=-1))


if __name__ == "__main__":
    key = jax.random.PRNGKey(0)
    k1, k2, k3, k4, k5, k6 = jax.random.split(key, 6)

    # Small embedding batch, consistent with a triplet-loss use case (f32 path).
    B, D = 8, 32
    x = jax.random.normal(k1, (B, D), dtype=jnp.float32)
    y = jax.random.normal(k2, (B, D), dtype=jnp.float32)
    dist = normalised_euclidean_distance(x, y)
    jax.block_until_ready(dist)
    assert dist.shape == (B,)
    assert jnp.allclose(dist, _reference(x, y), atol=1e-5, rtol=1e-5)

    # Ragged batch (not a multiple of the sublane tile): exercises the no-pad,
    # masked-last-block path.
    B2, D2 = 37, 96
    x2 = jax.random.normal(k3, (B2, D2), dtype=jnp.float32)
    y2 = jax.random.normal(k4, (B2, D2), dtype=jnp.float32)
    dist2 = normalised_euclidean_distance(x2, y2)
    jax.block_until_ready(dist2)
    assert dist2.shape == (B2,)
    assert jnp.allclose(dist2, _reference(x2, y2), atol=1e-5, rtol=1e-5)

    # Native bf16 pass-through (no wrapper up-cast; f32 accumulation in-kernel).
    B3, D3 = 24, 64
    x3 = jax.random.normal(k5, (B3, D3), dtype=jnp.bfloat16)
    y3 = jax.random.normal(k6, (B3, D3), dtype=jnp.bfloat16)
    dist3 = normalised_euclidean_distance(x3, y3)
    jax.block_until_ready(dist3)
    assert dist3.shape == (B3,)
    assert jnp.allclose(dist3, _reference(x3, y3), atol=1e-4, rtol=1e-4)

    print("KERNEL_OK")
</pallas_src>

<mosaic_0001>
module attributes {stable_mosaic.version = 11 : i64} {
  func.func @_ned_kernel(%arg0: i32, %arg1: memref<8x32xf32, #tpu.memory_space<vmem>>, %arg2: memref<8x32xf32, #tpu.memory_space<vmem>>, %arg3: memref<8x1xf32, #tpu.memory_space<vmem>>) attributes {dimension_semantics = [#tpu.dimension_semantics<parallel>], iteration_bounds = array<i64: 1>, scalar_prefetch = 0 : i64, scratch_operands = 0 : i64, tpu.core_type = #tpu.core_type<tc>, window_params = [{transform_indices = @transform_0, window_bounds = array<i64: 8, 32>}, {transform_indices = @transform_1, window_bounds = array<i64: 8, 32>}, {transform_indices = @transform_2, window_bounds = array<i64: 8, 1>}]} {
    %c0 = arith.constant 0 : index
    %c0_0 = arith.constant 0 : index
    %0 = vector.load %arg1[%c0, %c0_0] : memref<8x32xf32, #tpu.memory_space<vmem>>, vector<8x32xf32>
    %c0_1 = arith.constant 0 : index
    %c0_2 = arith.constant 0 : index
    %1 = vector.load %arg2[%c0_1, %c0_2] : memref<8x32xf32, #tpu.memory_space<vmem>>, vector<8x32xf32>
    %2 = arith.mulf %0, %0 : vector<8x32xf32>
    %cst = arith.constant dense<0.000000e+00> : vector<8xf32>
    %3 = vector.multi_reduction <add>, %2, %cst [1] : vector<8x32xf32> to vector<8xf32>
    %4 = vector.shape_cast %3 : vector<8xf32> to vector<8x1xf32>
    %cst_3 = arith.constant 1.000000e-24 : f32
    %5 = vector.broadcast %cst_3 : f32 to vector<8x1xf32>
    %6 = arith.maximumf %4, %5 : vector<8x1xf32>
    %7 = math.rsqrt %6 : vector<8x1xf32>
    %8 = arith.mulf %1, %1 : vector<8x32xf32>
    %cst_4 = arith.constant dense<0.000000e+00> : vector<8xf32>
    %9 = vector.multi_reduction <add>, %8, %cst_4 [1] : vector<8x32xf32> to vector<8xf32>
    %10 = vector.shape_cast %9 : vector<8xf32> to vector<8x1xf32>
    %cst_5 = arith.constant 1.000000e-24 : f32
    %11 = vector.broadcast %cst_5 : f32 to vector<8x1xf32>
    %12 = arith.maximumf %10, %11 : vector<8x1xf32>
    %13 = math.rsqrt %12 : vector<8x1xf32>
    %14 = vector.broadcast %7 : vector<8x1xf32> to vector<8x32xf32>
    %15 = arith.mulf %0, %14 : vector<8x32xf32>
    %16 = vector.broadcast %13 : vector<8x1xf32> to vector<8x32xf32>
    %17 = arith.mulf %1, %16 : vector<8x32xf32>
    %18 = arith.subf %15, %17 : vector<8x32xf32>
    %cst_6 = arith.constant 9.99999997E-7 : f32
    %19 = vector.broadcast %cst_6 : f32 to vector<8x32xf32>
    %20 = arith.addf %18, %19 : vector<8x32xf32>
    %21 = arith.mulf %20, %20 : vector<8x32xf32>
    %cst_7 = arith.constant dense<0.000000e+00> : vector<8xf32>
    %22 = vector.multi_reduction <add>, %21, %cst_7 [1] : vector<8x32xf32> to vector<8xf32>
    %23 = vector.shape_cast %22 : vector<8xf32> to vector<8x1xf32>
    %24 = math.sqrt %23 : vector<8x1xf32>
    %c0_8 = arith.constant 0 : index
    %c0_9 = arith.constant 0 : index
    %25 = vector.load %arg3[%c0_8, %c0_9] : memref<8x1xf32, #tpu.memory_space<vmem>>, vector<8x1xf32>
    tpu.vector_store %arg3[%c0_8, %c0_9], %24 {strides = array<i32>} : memref<8x1xf32, #tpu.memory_space<vmem>>, vector<8x1xf32>,
    return
  }
  func.func @transform_0(%arg0: i32) -> (i32, i32) {
    %c0_i32 = arith.constant 0 : i32
    %c0_i32_0 = arith.constant 0 : i32
    return %arg0, %c0_i32 : i32, i32
  }
  func.func @transform_1(%arg0: i32) -> (i32, i32) {
    %c0_i32 = arith.constant 0 : i32
    %c0_i32_0 = arith.constant 0 : i32
    return %arg0, %c0_i32 : i32, i32
  }
  func.func @transform_2(%arg0: i32) -> (i32, i32) {
    %c0_i32 = arith.constant 0 : i32
    %c0_i32_0 = arith.constant 0 : i32
    return %arg0, %c0_i32 : i32, i32
  }
}

</mosaic_0001>

<llo_original>
// kernel: tpu_custom_call.1
$region0: #{tpu_custom_call.1}
  #allocation0 [shape = 'u32[]', space=smem, size = 0x4, offset = 0x4, fixed_abs, tag = 'smem constant byte address 0x4 - core index']
  #allocation1 [shape = 'u32[144,128]{1,0:T(1,128)}', space=vmem, size = 0x12000, scoped, tag = 'internal scratch']
  %s0 = inlined_call_operand.hbm [shape: f32[8,32], index: 0, kind: input, shape index: {}]
  %s1 = inlined_call_operand.hbm [shape: f32[8,32], index: 1, kind: input, shape index: {}]
  %s2 = inlined_call_operand.vmem [shape: f32[8,1], index: 2, kind: output, shape index: {}]
  %s3 = sld [smem:[#allocation0]]
  $region26: #{tpu_custom_call.1} parent=0
    _
  %s5 = ssub.s32 1, %s3
  %s6 = scalar_select 0, %s5, %s3
  $region1: #{tpu_custom_call.1} parent=0
    #allocation2 [shape = 'u8[4096]{0}', space=vmem, size = 0x1000, scoped, tag = 'input window, operand 0, single buffered']
    #allocation3 [shape = 's32[1]{0}', space=sflag, size = 0x4, scoped, tag = 'scoped memory for tpu_custom_call.1']
    #allocation4 [shape = 'u8[4096]{0}', space=vmem, size = 0x1000, scoped, tag = 'input window, operand 1, single buffered']
    #allocation5 [shape = 's32[1]{0}', space=sflag, size = 0x4, scoped, tag = 'scoped memory for tpu_custom_call.1']
    %7 = vsyncpa [#allocation3], 0
    %8 = vsyncpa [#allocation5], 0
    // Predicated region
    $region2: #{tpu_custom_call.1} parent=1 // pred_check
      _
    $region3: #{tpu_custom_call.1} parent=1 // pred_check_branch
      %10 = sbr.rel (0) target = $region5
    $region4: #{tpu_custom_call.1} parent=1 // pred_region
      %s12 = ssub.s32 128, 128
      %13 = vsyncadd [#allocation3], %s12
      %s15 = sshll.u32 [#allocation2], 4
      %s16 = int_to_ptr.vmem [resolvable:$true] %s15
      %18 = dma.hbm_to_vmem [thread:$0]  %s0, 128, %s16, [#allocation3]
    $region5: #{tpu_custom_call.1} parent=1 // pred_fallthru
      _
    // Predicated region
    $region6: #{tpu_custom_call.1} parent=1 // pred_check
      _
    $region7: #{tpu_custom_call.1} parent=1 // pred_check_branch
      %20 = sbr.rel (0) target = $region9
    $region8: #{tpu_custom_call.1} parent=1 // pred_region
      %s22 = ssub.s32 128, 128
      %23 = vsyncadd [#allocation5], %s22
      %s25 = sshll.u32 [#allocation4], 4
      %s26 = int_to_ptr.vmem [resolvable:$true] %s25
      %28 = dma.hbm_to_vmem [thread:$0]  %s1, 128, %s26, [#allocation5]
    $region9: #{tpu_custom_call.1} parent=1 // pred_fallthru
      _
    // Predicated region
    $region10: #{tpu_custom_call.1} parent=1 // pred_check
      _
    $region11: #{tpu_custom_call.1} parent=1 // pred_check_branch
      %30 = sbr.rel (0) target = $region13
    $region12: #{tpu_custom_call.1} parent=1 // pred_region
      %31 = dma.done [#allocation3], 128
    $region13: #{tpu_custom_call.1} parent=1 // pred_fallthru
      _
    // Predicated region
    $region14: #{tpu_custom_call.1} parent=1 // pred_check
      _
    $region15: #{tpu_custom_call.1} parent=1 // pred_check_branch
      %33 = sbr.rel (0) target = $region17
    $region16: #{tpu_custom_call.1} parent=1 // pred_region
      %34 = dma.done [#allocation5], 128
    $region17: #{tpu_custom_call.1} parent=1 // pred_fallthru
      _
    %v35 = vld [vmem:[#allocation2] sm:$0xff]
    %v36 = vld [vmem:[#allocation4] sm:$0xff]
    %v37 = vmul.f32 %v35, %v35
    %vm38 = vcmask 261120
    %v39 = vsel %vm38, %v37, 0.0
    %40 = vadd.xlane.f32.xlu0 %v39
    %v41 = vpop.xlane.xlu0 %40
    %v42 = vmax.f32 %v41, 1e-24
    %v43 = vrsqrt.pop %v42
    %v44 = vmul.f32 %v36, %v36
    %v45 = vsel %vm38, %v44, 0.0
    %46 = vadd.xlane.f32.xlu0 %v45
    %v47 = vpop.xlane.xlu0 %46
    %v48 = vmax.f32 %v47, 1e-24
    %v49 = vrsqrt.pop %v48
    %v50 = vmul.f32 %v35, %v43
    %v51 = vmul.f32 %v36, %v49
    %v52 = vsub.f32 %v50, %v51
    %v53 = vadd.f32 %v52, 1e-06
    %v54 = vmul.f32 %v53, %v53
    %v55 = vsel %vm38, %v54, 0.0
    %56 = vadd.xlane.f32.xlu0 %v55
    %v57 = vpop.xlane.xlu0 %56
    %v58 = vrsqrt.pop %v57
    %v59 = vmul.f32 %v57, %v58
    %vm60 = vcmp.eq.f32.partialorder %v57, inf
    %v61 = vsel %vm60, %v57, %v59
    %vm62 = vcmp.eq.f32.partialorder %v57, 0.0
    %v63 = vand.u32 %v57, 2147483648
    %v64 = vsel %vm62, %v63, %v61
    %vm65 = vcmask 7168
    %66 = vst.msk [vmem:[%s2] sm:$0xff] %vm65, %v64
    // Predicated region
    $region18: #{tpu_custom_call.1} parent=1 // pred_check
      _
    $region19: #{tpu_custom_call.1} parent=1 // pred_check_branch
      %68 = sbr.rel (0) target = $region21
    $region20: #{tpu_custom_call.1} parent=1 // pred_region
      _
    $region21: #{tpu_custom_call.1} parent=1 // pred_fallthru
      _
    // Predicated region
    $region22: #{tpu_custom_call.1} parent=1 // pred_check
      _
    $region23: #{tpu_custom_call.1} parent=1 // pred_check_branch
      %70 = sbr.rel (0) target = $region25
    $region24: #{tpu_custom_call.1} parent=1 // pred_region
      _
    $region25: #{tpu_custom_call.1} parent=1 // pred_fallthru
      _
    %71 = vsyncpa [#allocation3], 1
    %72 = vsyncpa [#allocation5], 1

</llo_original>
